<compile_context>
chip_gen: v7x
topology: tpu7x:2x2x1
jax: 0.10.0
libtpu: 0.0.40
codegen_flags: <defaults>
</compile_context>

<pallas_src>
import functools
import numpy as np

import jax
import jax.numpy as jnp
from jax import lax
from jax.experimental import pallas as pl
from jax.experimental.pallas import tpu as pltpu


_TM, _TN = 512, 256        # output-tile targets (256-mult for v6e/v7x MXU, 128-mult v5e)
_TK = 1024                 # K is grid-tiled only when larger than this (fc2 at real size)
_VMEM_LIMIT = 32 * 1024 * 1024   # explicit scoped-VMEM budget; fits v5e/v6e/v7x
_NEG_INF = -1e30


def _round_up(x, m):
    return ((x + m - 1) // m) * m


def _tile(dim, desired):
    """Largest tile <= desired that exactly divides dim, else the full dim.
    Token/row dims are padded to 8/128 multiples upstream, so the full-dim
    fallback only triggers for small demo extents (full blocks are always legal)."""
    if dim <= desired:
        return dim
    for t in (desired, desired // 2, desired // 4):
        if t and dim % t == 0:
            return t
    return dim


def _cparams(dimension_semantics):
    return pltpu.CompilerParams(dimension_semantics=dimension_semantics,
                                vmem_limit_bytes=_VMEM_LIMIT)


def _bias_act(y, b, activation):
    y = y + b
    if activation == "gelu":
        y = jax.nn.gelu(y, approximate=False)   # exact erf, like nn.GELU() default
    return y


# -----------------------------------------------------------------------------
# Linear kernels (bf16 MXU operands, f32 accumulation + epilogue)
# -----------------------------------------------------------------------------

def _linear_kernel(x_ref, w_ref, b_ref, o_ref, *, activation):
    y = jnp.dot(x_ref[...], w_ref[...], preferred_element_type=jnp.float32)
    o_ref[...] = _bias_act(y, b_ref[...], activation).astype(o_ref.dtype)


def _linear_kernel_ktiled(x_ref, w_ref, b_ref, o_ref, *, activation):
    # f32 output block doubles as the accumulator (no extra VMEM scratch).
    k = pl.program_id(2)

    @pl.when(k == 0)
    def _():
        o_ref[...] = jnp.zeros_like(o_ref)

    o_ref[...] += jnp.dot(x_ref[...], w_ref[...], preferred_element_type=jnp.float32)

    @pl.when(k == pl.num_programs(2) - 1)
    def _():
        o_ref[...] = _bias_act(o_ref[...], b_ref[...], activation).astype(o_ref.dtype)


def linear(x, w, b, activation=None, out_dtype=None):
    """act(x @ w + b): tiled, pipelined MXU matmul with bf16 operands."""
    orig = x.shape
    K = orig[-1]
    M = int(np.prod(orig[:-1]))
    N = w.shape[1]
    out_dtype = out_dtype or jnp.float32
    x2 = x.reshape(M, K).astype(jnp.bfloat16)
    wb = w.astype(jnp.bfloat16)
    b2 = b.reshape(1, N).astype(jnp.float32)
    tm, tn = _tile(M, _TM), _tile(N, _TN)

    if K <= _TK:
        out = pl.pallas_call(
            functools.partial(_linear_kernel, activation=activation),
            out_shape=jax.ShapeDtypeStruct((M, N), out_dtype),
            grid=(M // tm, N // tn),
            in_specs=[
                pl.BlockSpec((tm, K), lambda i, j: (i, 0)),
                pl.BlockSpec((K, tn), lambda i, j: (0, j)),
                pl.BlockSpec((1, tn), lambda i, j: (0, j)),
            ],
            out_specs=pl.BlockSpec((tm, tn), lambda i, j: (i, j)),
            compiler_params=_cparams(("parallel", "parallel")),
        )(x2, wb, b2)
    else:
        # K-tiled path accumulates into the f32 output block.
        assert np.dtype(out_dtype) == np.dtype(jnp.float32)
        tk = _tile(K, _TK)
        out = pl.pallas_call(
            functools.partial(_linear_kernel_ktiled, activation=activation),
            out_shape=jax.ShapeDtypeStruct((M, N), jnp.float32),
            grid=(M // tm, N // tn, K // tk),
            in_specs=[
                pl.BlockSpec((tm, tk), lambda i, j, k: (i, k)),
                pl.BlockSpec((tk, tn), lambda i, j, k: (k, j)),
                pl.BlockSpec((1, tn), lambda i, j, k: (0, j)),
            ],
            out_specs=pl.BlockSpec((tm, tn), lambda i, j, k: (i, j)),
            compiler_params=_cparams(("parallel", "parallel", "arbitrary")),
        )(x2, wb, b2)
    return out.reshape(orig[:-1] + (N,))


def _linear_ls_res_kernel(x_ref, w_ref, b_ref, ls_ref, res_ref, o_ref):
    y = jnp.dot(x_ref[...], w_ref[...], preferred_element_type=jnp.float32)
    o_ref[...] = ((y + b_ref[...]) * ls_ref[...]
                  + res_ref[...].astype(jnp.float32)).astype(o_ref.dtype)


def _linear_ls_res_kernel_ktiled(x_ref, w_ref, b_ref, ls_ref, res_ref, o_ref):
    k = pl.program_id(2)

    @pl.when(k == 0)
    def _():
        o_ref[...] = jnp.zeros_like(o_ref)

    o_ref[...] += jnp.dot(x_ref[...], w_ref[...], preferred_element_type=jnp.float32)

    @pl.when(k == pl.num_programs(2) - 1)
    def _():
        o_ref[...] = ((o_ref[...] + b_ref[...]) * ls_ref[...]
                      + res_ref[...].astype(jnp.float32))


def linear_ls_residual(x, w, b, ls, res):
    """res + LayerScale * (x @ w + b): bf16 matmul with fused f32 epilogue."""
    orig = res.shape
    K = x.shape[-1]
    M = int(np.prod(x.shape[:-1]))
    N = w.shape[1]
    x2 = x.reshape(M, K).astype(jnp.bfloat16)
    wb = w.astype(jnp.bfloat16)
    b2 = b.reshape(1, N).astype(jnp.float32)
    ls2 = ls.reshape(1, N).astype(jnp.float32)
    res2 = res.reshape(M, N).astype(jnp.float32)
    tm, tn = _tile(M, _TM), _tile(N, _TN)

    if K <= _TK:
        out = pl.pallas_call(
            _linear_ls_res_kernel,
            out_shape=jax.ShapeDtypeStruct((M, N), jnp.float32),
            grid=(M // tm, N // tn),
            in_specs=[
                pl.BlockSpec((tm, K), lambda i, j: (i, 0)),
                pl.BlockSpec((K, tn), lambda i, j: (0, j)),
                pl.BlockSpec((1, tn), lambda i, j: (0, j)),
                pl.BlockSpec((1, tn), lambda i, j: (0, j)),
                pl.BlockSpec((tm, tn), lambda i, j: (i, j)),
            ],
            out_specs=pl.BlockSpec((tm, tn), lambda i, j: (i, j)),
            compiler_params=_cparams(("parallel", "parallel")),
        )(x2, wb, b2, ls2, res2)
    else:
        tk = _tile(K, _TK)
        out = pl.pallas_call(
            _linear_ls_res_kernel_ktiled,
            out_shape=jax.ShapeDtypeStruct((M, N), jnp.float32),
            grid=(M // tm, N // tn, K // tk),
            in_specs=[
                pl.BlockSpec((tm, tk), lambda i, j, k: (i, k)),
                pl.BlockSpec((tk, tn), lambda i, j, k: (k, j)),
                pl.BlockSpec((1, tn), lambda i, j, k: (0, j)),
                pl.BlockSpec((1, tn), lambda i, j, k: (0, j)),
                pl.BlockSpec((tm, tn), lambda i, j, k: (i, j)),
            ],
            out_specs=pl.BlockSpec((tm, tn), lambda i, j, k: (i, j)),
            compiler_params=_cparams(("parallel", "parallel", "arbitrary")),
        )(x2, wb, b2, ls2, res2)
    return out.reshape(orig)


def _ln_linear_kernel(x_ref, g_ref, bln_ref, w_ref, b_ref, o_ref, xn_ref, *,
                      eps, activation):
    # LayerNorm (f32 stats) is computed once per row tile (j == 0), cached as a
    # bf16 slab in VMEM scratch and reused for every N tile (j axis "arbitrary").
    @pl.when(pl.program_id(1) == 0)
    def _():
        x = x_ref[...].astype(jnp.float32)
        mean = jnp.mean(x, axis=-1, keepdims=True)
        var = jnp.mean(jnp.square(x - mean), axis=-1, keepdims=True)
        xn = (x - mean) * lax.rsqrt(var + eps)
        xn_ref[...] = (xn * g_ref[...] + bln_ref[...]).astype(xn_ref.dtype)

    y = jnp.dot(xn_ref[...], w_ref[...], preferred_element_type=jnp.float32)
    o_ref[...] = _bias_act(y, b_ref[...], activation).astype(o_ref.dtype)


def ln_linear(x, gamma, beta, w, b, activation=None, out_dtype=None, eps=1e-6):
    """act(LayerNorm(x) @ w + b); K = D kept whole so LN sees full rows."""
    orig = x.shape
    K = orig[-1]
    M = int(np.prod(orig[:-1]))
    N = w.shape[1]
    out_dtype = out_dtype or x.dtype
    tm, tn = _tile(M, _TM), _tile(N, _TN)
    out = pl.pallas_call(
        functools.partial(_ln_linear_kernel, eps=eps, activation=activation),
        out_shape=jax.ShapeDtypeStruct((M, N), out_dtype),
        grid=(M // tm, N // tn),
        in_specs=[
            pl.BlockSpec((tm, K), lambda i, j: (i, 0)),
            pl.BlockSpec((1, K), lambda i, j: (0, 0)),
            pl.BlockSpec((1, K), lambda i, j: (0, 0)),
            pl.BlockSpec((K, tn), lambda i, j: (0, j)),
            pl.BlockSpec((1, tn), lambda i, j: (0, j)),
        ],
        out_specs=pl.BlockSpec((tm, tn), lambda i, j: (i, j)),
        scratch_shapes=[pltpu.VMEM((tm, K), jnp.bfloat16)],
        compiler_params=_cparams(("parallel", "arbitrary")),
    )(x.reshape(M, K), gamma.reshape(1, K).astype(jnp.float32),
      beta.reshape(1, K).astype(jnp.float32), w.astype(jnp.bfloat16),
      b.reshape(1, N).astype(jnp.float32))
    return out.reshape(orig[:-1] + (N,))


# -----------------------------------------------------------------------------
# Flash-style attention over the fused (B, Sp, 3D) QKV tensor
# -----------------------------------------------------------------------------

def _flash_attn_kernel(q_ref, k_ref, v_ref, o_ref, m_ref, l_ref, acc_ref, *,
                       heads_per_group, head_dim, scale, seq_len, block_kv):
    ki = pl.program_id(3)
    bq = q_ref.shape[1]

    @pl.when(ki == 0)
    def _():
        m_ref[...] = jnp.full_like(m_ref, _NEG_INF)
        l_ref[...] = jnp.zeros_like(l_ref)
        acc_ref[...] = jnp.zeros_like(acc_ref)

    q = q_ref[0]                                    # (bq,  GW) bf16
    k = k_ref[0]                                    # (bkv, GW) bf16
    v = v_ref[0]                                    # (bkv, GW) bf16

    # mask padded key positions (sequence is padded up to a block multiple)
    kv_ids = ki * block_kv + lax.broadcasted_iota(jnp.int32, (1, block_kv), 1)
    key_valid = kv_ids < seq_len                    # (1, bkv)

    alphas, pvs = [], []
    for h in range(heads_per_group):                # static unroll over 64-wide heads
        sl = slice(h * head_dim, (h + 1) * head_dim)
        s = lax.dot_general(q[:, sl], k[:, sl], (((1,), (1,)), ((), ())),
                            preferred_element_type=jnp.float32) * scale
        s = jnp.where(key_valid, s, _NEG_INF)
        m_prev = m_ref[h]                           # (bq, 1)
        m_new = jnp.maximum(m_prev, jnp.max(s, axis=-1, keepdims=True))
        alpha = jnp.exp(m_prev - m_new)
        p = jnp.exp(s - m_new)
        l_ref[h] = alpha * l_ref[h] + jnp.sum(p, axis=-1, keepdims=True)
        m_ref[h] = m_new
        alphas.append(jnp.broadcast_to(alpha, (bq, head_dim)))
        pvs.append(jnp.dot(p.astype(v.dtype), v[:, sl],
                           preferred_element_type=jnp.float32))

    # single lane-dense accumulator update per kv step
    acc_ref[...] = (jnp.concatenate(alphas, axis=-1) * acc_ref[...]
                    + jnp.concatenate(pvs, axis=-1))

    @pl.when(ki == pl.num_programs(3) - 1)
    def _():
        inv = jnp.concatenate(
            [jnp.broadcast_to(pl.reciprocal(l_ref[h], approx=True), (bq, head_dim))
             for h in range(heads_per_group)], axis=-1)
        o_ref[0] = (acc_ref[...] * inv).astype(o_ref.dtype)


def attention(qkv, num_heads, head_dim, scale, seq_len, block_q, block_kv):
    """Flash attention on the fused (B, Sp, 3D) bf16 QKV tensor -> (B, Sp, D) bf16.
    Heads are streamed in 128-lane groups via BlockSpec column-block indexing."""
    B, Sp, threeD = qkv.shape
    D = threeD // 3
    # group heads so each DMA slab is 128 lanes wide (e.g. 2 x 64-wide heads)
    group_w = head_dim
    while group_w < 128 and group_w * 2 <= D and D % (group_w * 2) == 0:
        group_w *= 2
    hpg = group_w // head_dim
    n_groups = D // group_w
    grid = (B, n_groups, Sp // block_q, Sp // block_kv)

    q_spec = pl.BlockSpec((1, block_q, group_w), lambda b, g, qi, ki: (b, qi, g))
    k_spec = pl.BlockSpec((1, block_kv, group_w),
                          lambda b, g, qi, ki: (b, ki, n_groups + g))
    v_spec = pl.BlockSpec((1, block_kv, group_w),
                          lambda b, g, qi, ki: (b, ki, 2 * n_groups + g))

    return pl.pallas_call(
        functools.partial(_flash_attn_kernel, heads_per_group=hpg,
                          head_dim=head_dim, scale=scale, seq_len=seq_len,
                          block_kv=block_kv),
        out_shape=jax.ShapeDtypeStruct((B, Sp, D), qkv.dtype),
        grid=grid,
        in_specs=[q_spec, k_spec, v_spec],
        out_specs=pl.BlockSpec((1, block_q, group_w),
                               lambda b, g, qi, ki: (b, qi, g)),
        scratch_shapes=[
            pltpu.VMEM((hpg, block_q, 1), jnp.float32),    # running max (per head)
            pltpu.VMEM((hpg, block_q, 1), jnp.float32),    # running sum (per head)
            pltpu.VMEM((block_q, group_w), jnp.float32),   # output accumulator
        ],
        compiler_params=_cparams(("parallel", "parallel", "parallel", "arbitrary")),
    )(qkv, qkv, qkv)


# -----------------------------------------------------------------------------
# LayerNorm (used only for the final norm)
# -----------------------------------------------------------------------------

def _layernorm_kernel(x_ref, g_ref, b_ref, o_ref, *, eps):
    x = x_ref[...].astype(jnp.float32)
    mean = jnp.mean(x, axis=-1, keepdims=True)
    var = jnp.mean(jnp.square(x - mean), axis=-1, keepdims=True)
    xn = (x - mean) * lax.rsqrt(var + eps)
    o_ref[...] = (xn * g_ref[...] + b_ref[...]).astype(o_ref.dtype)


def layer_norm(x, gamma, beta, eps=1e-6):
    orig = x.shape
    D = orig[-1]
    M = int(np.prod(orig[:-1]))
    tm = _tile(M, _TM)
    out = pl.pallas_call(
        functools.partial(_layernorm_kernel, eps=eps),
        out_shape=jax.ShapeDtypeStruct((M, D), x.dtype),
        grid=(M // tm,),
        in_specs=[
            pl.BlockSpec((tm, D), lambda i: (i, 0)),
            pl.BlockSpec((1, D), lambda i: (0, 0)),
            pl.BlockSpec((1, D), lambda i: (0, 0)),
        ],
        out_specs=pl.BlockSpec((tm, D), lambda i: (i, 0)),
        compiler_params=_cparams(("parallel",)),
    )(x.reshape(M, D), gamma.reshape(1, D), beta.reshape(1, D))
    return out.reshape(orig)


# -----------------------------------------------------------------------------
# ViT (DINOv2-style) forward, composed from the fused kernels above
# -----------------------------------------------------------------------------

def patch_embed(x, w_conv, b):
    """Conv2d(kernel=stride=patch) == patchify + matmul.
    x: (B, C, H, W) NCHW, w_conv: (D, C, p, p) -> tokens (B, Hp*Wp, D)."""
    B, C, H, W = x.shape
    D, _, p, _ = w_conv.shape
    Hp, Wp = H // p, W // p
    patches = (
        x.reshape(B, C, Hp, p, Wp, p)
        .transpose(0, 2, 4, 1, 3, 5)          # (B, Hp, Wp, C, p, p) - conv flatten order
        .reshape(B, Hp * Wp, C * p * p)
    )
    w = w_conv.reshape(D, C * p * p).T        # (C*p*p, D)
    return linear(patches, w, b, out_dtype=jnp.float32)


def block_forward(x, p, num_heads, seq_len, block_q, block_kv):
    """One DINOv2 block = 5 fused pallas_calls:
    [LN1+QKV(bf16)] -> [flash attention] -> [proj+LS1+residual]
    -> [LN2+fc1+GELU(bf16)] -> [fc2+LS2+residual]."""
    B, Sp, D = x.shape
    Dh = D // num_heads
    scale = Dh ** -0.5

    qkv = ln_linear(x, p["norm1_w"], p["norm1_b"], p["qkv_w"], p["qkv_b"],
                    out_dtype=jnp.bfloat16)                                # (B,Sp,3D)
    o = attention(qkv, num_heads, Dh, scale, seq_len, block_q, block_kv)   # (B,Sp,D) bf16
    x = linear_ls_residual(o, p["proj_w"], p["proj_b"], p["ls1"], x)

    h = ln_linear(x, p["norm2_w"], p["norm2_b"], p["fc1_w"], p["fc1_b"],
                  activation="gelu", out_dtype=jnp.bfloat16)
    x = linear_ls_residual(h, p["fc2_w"], p["fc2_b"], p["ls2"], x)
    return x


def dino_encoder_forward(x, params, *, num_heads, num_registers):
    """Returns (x_norm_clstoken, x_norm_patchtokens, x_prenorm) like DinoEncoder.forward."""
    B = x.shape[0]
    tokens = patch_embed(x, params["patch_w"], params["patch_b"])  # (B, Np, D)
    D = tokens.shape[-1]

    cls = jnp.broadcast_to(params["cls_token"], (B, 1, D))
    t = jnp.concatenate([cls, tokens], axis=1)
    # interpolate_pos_encoding at native resolution returns pos_embed unchanged
    t = t + params["pos_embed"]
    reg = jnp.broadcast_to(params["register_tokens"], (B, num_registers, D))
    t = jnp.concatenate([t[:, :1], reg, t[:, 1:]], axis=1)         # (B, S, D)
    # TODO(synk): random_masking (argsort/gather) path unused because img_mask_ratio=0 default.

    S = t.shape[1]
    # pad the token axis to a block multiple: 128-token blocks at real DINOv2 sizes,
    # 8-token blocks for tiny demo shapes (keeps >1 q/kv block so flash accumulation
    # and key-padding masking are exercised). Padded keys are masked in attention.
    block_seq = 128 if S >= 128 else 8
    Sp = _round_up(S, block_seq)
    if Sp > S:
        t = jnp.pad(t, ((0, 0), (0, Sp - S), (0, 0)))

    for blk in params["blocks"]:
        t = block_forward(t, blk, num_heads, S, block_seq, block_seq)

    x_norm = layer_norm(t, params["norm_w"], params["norm_b"])
    x_prenorm = t[:, :S]
    x_norm_clstoken = x_norm[:, 0]
    x_norm_patchtokens = x_norm[:, 1 + num_registers:S]
    return x_norm_clstoken, x_norm_patchtokens, x_prenorm


# -----------------------------------------------------------------------------
# Deterministic synthetic parameters (small DINOv2-style ViT)
# -----------------------------------------------------------------------------

def init_params(key, *, in_chans, patch, embed_dim, depth, num_heads, mlp_ratio,
                num_registers, num_patches):
    keys = iter(jax.random.split(key, 8 + 8 * depth))

    def nrm(shape, scale=0.02):
        return scale * jax.random.normal(next(keys), shape, jnp.float32)

    D = embed_dim
    Dmlp = int(mlp_ratio * D)
    params = {
        "patch_w": nrm((D, in_chans, patch, patch)),
        "patch_b": jnp.zeros((D,), jnp.float32),
        "cls_token": nrm((1, 1, D)),
        "pos_embed": nrm((1, 1 + num_patches, D)),
        "register_tokens": nrm((1, num_registers, D)),
        "norm_w": jnp.ones((D,), jnp.float32),
        "norm_b": jnp.zeros((D,), jnp.float32),
        "blocks": [],
    }
    for _ in range(depth):
        blk = {
            "norm1_w": jnp.ones((D,), jnp.float32),
            "norm1_b": jnp.zeros((D,), jnp.float32),
            "qkv_w": nrm((D, 3 * D)),
            "qkv_b": jnp.zeros((3 * D,), jnp.float32),
            "proj_w": nrm((D, D)),
            "proj_b": jnp.zeros((D,), jnp.float32),
            "ls1": 1e-5 * jnp.ones((D,), jnp.float32),   # LayerScale
            "norm2_w": jnp.ones((D,), jnp.float32),
            "norm2_b": jnp.zeros((D,), jnp.float32),
            "fc1_w": nrm((D, Dmlp)),
            "fc1_b": jnp.zeros((Dmlp,), jnp.float32),
            "fc2_w": nrm((Dmlp, D)),
            "fc2_b": jnp.zeros((D,), jnp.float32),
            "ls2": 1e-5 * jnp.ones((D,), jnp.float32),
        }
        params["blocks"].append(blk)
    return params


# -----------------------------------------------------------------------------
# Pure-JAX reference, mirroring the kernels' precision policy (bf16 MXU operands,
# f32 accumulation / LN / softmax).  The only kernel-side approximation left is
# the EUP reciprocal (approx=True) in the softmax normalization.
# -----------------------------------------------------------------------------

def reference_forward(x, params, *, num_heads, num_registers):
    bf16, f32 = jnp.bfloat16, jnp.float32

    def bdot(a, w):
        return jnp.dot(a.astype(bf16), w.astype(bf16), preferred_element_type=f32)

    def ln(t, g, b, eps=1e-6):
        mu = jnp.mean(t, -1, keepdims=True)
        var = jnp.mean((t - mu) ** 2, -1, keepdims=True)
        return (t - mu) / jnp.sqrt(var + eps) * g + b

    B, C, H, W = x.shape
    D, _, p, _ = params["patch_w"].shape
    Hp, Wp = H // p, W // p
    patches = (x.reshape(B, C, Hp, p, Wp, p)
               .transpose(0, 2, 4, 1, 3, 5).reshape(B, Hp * Wp, C * p * p))
    t = bdot(patches, params["patch_w"].reshape(D, -1).T) + params["patch_b"]
    cls = jnp.broadcast_to(params["cls_token"], (B, 1, D))
    t = jnp.concatenate([cls, t], 1) + params["pos_embed"]
    reg = jnp.broadcast_to(params["register_tokens"], (B, num_registers, D))
    t = jnp.concatenate([t[:, :1], reg, t[:, 1:]], 1)
    Dh = D // num_heads
    for blk in params["blocks"]:
        h = ln(t, blk["norm1_w"], blk["norm1_b"])
        qkv = (bdot(h, blk["qkv_w"]) + blk["qkv_b"]).astype(bf16)
        B_, S, _ = qkv.shape
        qkv = qkv.reshape(B_, S, 3, num_heads, Dh).transpose(2, 0, 3, 1, 4)
        q, k, v = qkv[0], qkv[1], qkv[2]
        s = jnp.einsum("bhqd,bhkd->bhqk", q, k,
                       preferred_element_type=f32) * (Dh ** -0.5)
        a = jax.nn.softmax(s, axis=-1)
        o = jnp.einsum("bhqk,bhkd->bhqd", a.astype(bf16), v,
                       preferred_element_type=f32)
        o = o.transpose(0, 2, 1, 3).reshape(B_, S, D).astype(bf16)
        t = t + blk["ls1"] * (bdot(o, blk["proj_w"]) + blk["proj_b"])
        h = ln(t, blk["norm2_w"], blk["norm2_b"])
        h = jax.nn.gelu(bdot(h, blk["fc1_w"]) + blk["fc1_b"],
                        approximate=False).astype(bf16)
        t = t + blk["ls2"] * (bdot(h, blk["fc2_w"]) + blk["fc2_b"])
    xn = ln(t, params["norm_w"], params["norm_b"])
    return xn[:, 0], xn[:, 1 + num_registers:], t


# -----------------------------------------------------------------------------

if __name__ == "__main__":
    # Small DINOv2-style configuration (patch 14 like dinov2_vitb14_reg, scaled down).
    B, C, H, W = 2, 3, 28, 28
    PATCH = 14
    EMBED_DIM = 128            # head_dim = 64 like DINOv2-B, 2 heads => 1 x 128-lane group
    DEPTH = 2
    NUM_HEADS = 2
    MLP_RATIO = 4
    NUM_REGISTERS = 4
    NUM_PATCHES = (H // PATCH) * (W // PATCH)  # 4  -> S = 1 + 4 + 4 = 9 (padded to 16)

    key = jax.random.PRNGKey(0)
    kx, kp = jax.random.split(key)
    x = jax.random.normal(kx, (B, C, H, W), jnp.float32)   # NCHW, like PyTorch

    params = init_params(
        kp,
        in_chans=C, patch=PATCH, embed_dim=EMBED_DIM, depth=DEPTH,
        num_heads=NUM_HEADS, mlp_ratio=MLP_RATIO,
        num_registers=NUM_REGISTERS, num_patches=NUM_PATCHES,
    )

    cls_tok, patch_tok, prenorm = dino_encoder_forward(
        x, params, num_heads=NUM_HEADS, num_registers=NUM_REGISTERS
    )
    jax.block_until_ready((cls_tok, patch_tok, prenorm))

    assert cls_tok.shape == (B, EMBED_DIM)
    assert patch_tok.shape == (B, NUM_PATCHES, EMBED_DIM)
    assert prenorm.shape == (B, 1 + NUM_REGISTERS + NUM_PATCHES, EMBED_DIM)

    # Validate the fused kernels against the pure-JAX reference that mirrors the
    # bf16-operand / f32-accumulate precision policy (only intentional kernel
    # deviations: online softmax + approx EUP reciprocal, both << 5e-3 here).
    ref_cls, ref_patch, ref_pre = reference_forward(
        x, params, num_heads=NUM_HEADS, num_registers=NUM_REGISTERS)
    np.testing.assert_allclose(np.asarray(cls_tok), np.asarray(ref_cls), rtol=5e-3, atol=5e-3)
    np.testing.assert_allclose(np.asarray(patch_tok), np.asarray(ref_patch), rtol=5e-3, atol=5e-3)
    np.testing.assert_allclose(np.asarray(prenorm), np.asarray(ref_pre), rtol=5e-3, atol=5e-3)

    # Also exercise the K-tiled accumulate-into-output path (only hit by fc2 at
    # real DINOv2 sizes, K=3072 > 1024), so it is compile- and correctness-checked.
    kk = 2 * _TK
    xt = jax.random.normal(jax.random.PRNGKey(1), (16, kk), jnp.float32).astype(jnp.bfloat16)
    wt = 0.02 * jax.random.normal(jax.random.PRNGKey(2), (kk, 128), jnp.float32)
    bt = 0.1 * jnp.ones((128,), jnp.float32)
    lst = jnp.full((128,), 0.5, jnp.float32)
    rest = jax.random.normal(jax.random.PRNGKey(3), (16, 128), jnp.float32)
    got = linear_ls_residual(xt, wt, bt, lst, rest)
    want = rest + lst * (jnp.dot(xt, wt.astype(jnp.bfloat16),
                                 preferred_element_type=jnp.float32) + bt)
    jax.block_until_ready(got)
    np.testing.assert_allclose(np.asarray(got), np.asarray(want), rtol=1e-3, atol=1e-3)

    print("KERNEL_OK")
</pallas_src>

<mosaic_0001>
module attributes {stable_mosaic.version = 11 : i64} {
  func.func @_linear_kernel(%arg0: i32, %arg1: i32, %arg2: memref<8x588xbf16, #tpu.memory_space<vmem>>, %arg3: memref<588x128xbf16, #tpu.memory_space<vmem>>, %arg4: memref<1x128xf32, #tpu.memory_space<vmem>>, %arg5: memref<8x128xf32, #tpu.memory_space<vmem>>) attributes {dimension_semantics = [#tpu.dimension_semantics<parallel>, #tpu.dimension_semantics<parallel>], iteration_bounds = array<i64: 1, 1>, scalar_prefetch = 0 : i64, scratch_operands = 0 : i64, tpu.core_type = #tpu.core_type<tc>, window_params = [{transform_indices = @transform_0, window_bounds = array<i64: 8, 588>}, {transform_indices = @transform_1, window_bounds = array<i64: 588, 128>}, {transform_indices = @transform_2, window_bounds = array<i64: 1, 128>}, {transform_indices = @transform_3, window_bounds = array<i64: 8, 128>}]} {
    %c0 = arith.constant 0 : index
    %c0_0 = arith.constant 0 : index
    %0 = vector.load %arg2[%c0, %c0_0] : memref<8x588xbf16, #tpu.memory_space<vmem>>, vector<8x588xbf16>
    %c0_1 = arith.constant 0 : index
    %c0_2 = arith.constant 0 : index
    %1 = vector.load %arg3[%c0_1, %c0_2] : memref<588x128xbf16, #tpu.memory_space<vmem>>, vector<588x128xbf16>
    %cst = arith.constant dense<0.000000e+00> : vector<8x128xf32>
    %2 = tpu.matmul %0, %1, %cst {dimension_numbers = #tpu.dot_dimension_numbers<[1], [0], [0], [1], [0, 0, 1, 1], [], []>} : vector<8x588xbf16>, vector<588x128xbf16>, vector<8x128xf32> -> vector<8x128xf32>
    %c0_3 = arith.constant 0 : index
    %c0_4 = arith.constant 0 : index
    %3 = vector.load %arg4[%c0_3, %c0_4] : memref<1x128xf32, #tpu.memory_space<vmem>>, vector<1x128xf32>
    %4 = vector.broadcast %3 : vector<1x128xf32> to vector<8x128xf32>
    %5 = arith.addf %2, %4 : vector<8x128xf32>
    %c0_5 = arith.constant 0 : index
    %c0_6 = arith.constant 0 : index
    %6 = vector.load %arg5[%c0_5, %c0_6] : memref<8x128xf32, #tpu.memory_space<vmem>>, vector<8x128xf32>
    tpu.vector_store %arg5[%c0_5, %c0_6], %5 {strides = array<i32>} : memref<8x128xf32, #tpu.memory_space<vmem>>, vector<8x128xf32>,
    return
  }
  func.func @transform_0(%arg0: i32, %arg1: i32) -> (i32, i32) {
    %c0_i32 = arith.constant 0 : i32
    %c0_i32_0 = arith.constant 0 : i32
    return %arg0, %c0_i32 : i32, i32
  }
  func.func @transform_1(%arg0: i32, %arg1: i32) -> (i32, i32) {
    %c0_i32 = arith.constant 0 : i32
    %c0_i32_0 = arith.constant 0 : i32
    return %c0_i32, %arg1 : i32, i32
  }
  func.func @transform_2(%arg0: i32, %arg1: i32) -> (i32, i32) {
    %c0_i32 = arith.constant 0 : i32
    %c0_i32_0 = arith.constant 0 : i32
    return %c0_i32, %arg1 : i32, i32
  }
  func.func @transform_3(%arg0: i32, %arg1: i32) -> (i32, i32) {
    %c0_i32 = arith.constant 0 : i32
    return %arg0, %arg1 : i32, i32
  }
}

</mosaic_0001>

<llo_original>
// kernel: tpu_custom_call.1
$region0: #{tpu_custom_call.1}
  #allocation0 [shape = 'u32[]', space=smem, size = 0x4, offset = 0x4, fixed_abs, tag = 'smem constant byte address 0x4 - core index']
  #allocation1 [shape = 'u32[144,128]{1,0:T(1,128)}', space=vmem, size = 0x12000, scoped, tag = 'internal scratch']
  %s0 = inlined_call_operand.hbm [shape: bf16[8,588], index: 0, kind: input, shape index: {}]
  %s1 = inlined_call_operand.hbm [shape: bf16[588,128], index: 1, kind: input, shape index: {}]
  %s2 = inlined_call_operand.vmem [shape: f32[1,128], index: 2, kind: input, shape index: {}]
  %s3 = inlined_call_operand.hbm [shape: f32[8,128], index: 3, kind: output, shape index: {}]
  %s4 = sld [smem:[#allocation0]]
  $region30: #{tpu_custom_call.1} parent=0
    _
  %s6 = ssub.s32 1, %s4
  %s7 = scalar_select 0, %s6, %s4
  $region1: #{tpu_custom_call.1} parent=0
    #allocation2 [shape = 'u8[10240]{0}', space=vmem, size = 0x2800, scoped, tag = 'input window, operand 0, single buffered']
    #allocation3 [shape = 's32[1]{0}', space=sflag, size = 0x4, scoped, tag = 'scoped memory for tpu_custom_call.1']
    #allocation4 [shape = 's32[1]{0}', space=sflag, size = 0x4, scoped, tag = 'scoped memory for tpu_custom_call.1']
    #allocation5 [shape = 'u8[151552]{0}', space=vmem, size = 0x25000, scoped, tag = 'input window, operand 1, single buffered']
    #allocation6 [shape = 's32[1]{0}', space=sflag, size = 0x4, scoped, tag = 'scoped memory for tpu_custom_call.1']
    #allocation7 [shape = 'u8[4096]{0}', space=vmem, size = 0x1000, scoped, tag = 'output window, operand 0, single buffered']
    %8 = vsyncpa [#allocation3], 0
    %9 = vsyncpa [#allocation6], 0
    %10 = vsyncpa [#allocation4], 0
    // Predicated region
    $region2: #{tpu_custom_call.1} parent=1 // pred_check
      _
    $region3: #{tpu_custom_call.1} parent=1 // pred_check_branch
      %12 = sbr.rel (0) target = $region5
    $region4: #{tpu_custom_call.1} parent=1 // pred_region
      %s14 = ssub.s32 320, 320
      %15 = vsyncadd [#allocation3], %s14
      %s17 = sshll.u32 [#allocation2], 4
      %s18 = int_to_ptr.vmem [resolvable:$true] %s17
      %20 = dma.hbm_to_vmem [thread:$0]  %s0, 320, %s18, [#allocation3]
    $region5: #{tpu_custom_call.1} parent=1 // pred_fallthru
      _
    // Predicated region
    $region6: #{tpu_custom_call.1} parent=1 // pred_check
      _
    $region7: #{tpu_custom_call.1} parent=1 // pred_check_branch
      %22 = sbr.rel (0) target = $region9
    $region8: #{tpu_custom_call.1} parent=1 // pred_region
      %s24 = ssub.s32 4736, 4736
      %25 = vsyncadd [#allocation6], %s24
      %s26 = sshll.u32 [#allocation5], 4
      %s27 = int_to_ptr.vmem [resolvable:$true] %s26
      %32 = dma.hbm_to_vmem [thread:$0]  %s1, 4736, %s27, [#allocation6], 64, 64, 4
    $region9: #{tpu_custom_call.1} parent=1 // pred_fallthru
      _
    // Predicated region
    $region10: #{tpu_custom_call.1} parent=1 // pred_check
      _
    $region11: #{tpu_custom_call.1} parent=1 // pred_check_branch
      %34 = sbr.rel (0) target = $region13
    $region12: #{tpu_custom_call.1} parent=1 // pred_region
      _
    $region13: #{tpu_custom_call.1} parent=1 // pred_fallthru
      _
    // Predicated region
    $region14: #{tpu_custom_call.1} parent=1 // pred_check
      _
    $region15: #{tpu_custom_call.1} parent=1 // pred_check_branch
      %36 = sbr.rel (0) target = $region17
    $region16: #{tpu_custom_call.1} parent=1 // pred_region
      %37 = dma.done [#allocation3], 320
    $region17: #{tpu_custom_call.1} parent=1 // pred_fallthru
      _
    // Predicated region
    $region18: #{tpu_custom_call.1} parent=1 // pred_check
      _
    $region19: #{tpu_custom_call.1} parent=1 // pred_check_branch
      %39 = sbr.rel (0) target = $region21
    $region20: #{tpu_custom_call.1} parent=1 // pred_region
      %40 = dma.done [#allocation6], 4736
    $region21: #{tpu_custom_call.1} parent=1 // pred_fallthru
      _
    %v42 = vld [vmem:[#allocation2] sm:$0xff]
    %v43 = vld [vmem:[#allocation2 + $0x8] sm:$0xff]
    %v44 = vld [vmem:[#allocation2 + $0x10] sm:$0xf]
    %v45 = vld [vmem:[#allocation5] sm:$0xf]
    %v46 = vld [vmem:[#allocation5 + $0x4] sm:$0xf]
    %v47 = vld [vmem:[#allocation5 + $0x8] sm:$0xf]
    %v48 = vld [vmem:[#allocation5 + $0xc] sm:$0xf]
    %v49 = vld [vmem:[#allocation5 + $0x10] sm:$0xf]
    %v50 = vld [vmem:[#allocation5 + $0x14] sm:$0xf]
    %v51 = vld [vmem:[#allocation5 + $0x18] sm:$0xf]
    %v52 = vld [vmem:[#allocation5 + $0x1c] sm:$0xf]
    %v53 = vld [vmem:[#allocation5 + $0x20] sm:$0xf]
    %v54 = vld [vmem:[#allocation5 + $0x24] sm:$0xf]
    %v55 = vld [vmem:[#allocation5 + $0x28] sm:$0xf]
    %v56 = vld [vmem:[#allocation5 + $0x2c] sm:$0xf]
    %v57 = vld [vmem:[#allocation5 + $0x30] sm:$0xf]
    %v58 = vld [vmem:[#allocation5 + $0x34] sm:$0xf]
    %v59 = vld [vmem:[#allocation5 + $0x38] sm:$0xf]
    %v60 = vld [vmem:[#allocation5 + $0x3c] sm:$0xf]
    %v61 = vld [vmem:[#allocation5 + $0x40] sm:$0xf]
    %v62 = vld [vmem:[#allocation5 + $0x44] sm:$0xf]
    %v63 = vld [vmem:[#allocation5 + $0x48] sm:$0xf]
    %v64 = vld [vmem:[#allocation5 + $0x4c] sm:$0xf]
    %v65 = vld [vmem:[#allocation5 + $0x50] sm:$0xf]
    %v66 = vld [vmem:[#allocation5 + $0x54] sm:$0xf]
    %v67 = vld [vmem:[#allocation5 + $0x58] sm:$0xf]
    %v68 = vld [vmem:[#allocation5 + $0x5c] sm:$0xf]
    %v69 = vld [vmem:[#allocation5 + $0x60] sm:$0xf]
    %v70 = vld [vmem:[#allocation5 + $0x64] sm:$0xf]
    %v71 = vld [vmem:[#allocation5 + $0x68] sm:$0xf]
    %v72 = vld [vmem:[#allocation5 + $0x6c] sm:$0xf]
    %v73 = vld [vmem:[#allocation5 + $0x70] sm:$0xf]
    %v74 = vld [vmem:[#allocation5 + $0x74] sm:$0xf]
    %v75 = vld [vmem:[#allocation5 + $0x78] sm:$0xf]
    %v76 = vld [vmem:[#allocation5 + $0x7c] sm:$0xf]
    %v77 = vld [vmem:[#allocation5 + $0x80] sm:$0xf]
    %v78 = vld [vmem:[#allocation5 + $0x84] sm:$0xf]
    %v79 = vld [vmem:[#allocation5 + $0x88] sm:$0xf]
    %v80 = vld [vmem:[#allocation5 + $0x8c] sm:$0xf]
    %v81 = vld [vmem:[#allocation5 + $0x90] sm:$0xf]
    %v82 = vld [vmem:[#allocation5 + $0x94] sm:$0xf]
    %v83 = vld [vmem:[#allocation5 + $0x98] sm:$0xf]
    %v84 = vld [vmem:[#allocation5 + $0x9c] sm:$0xf]
    %v85 = vld [vmem:[#allocation5 + $0xa0] sm:$0xf]
    %v86 = vld [vmem:[#allocation5 + $0xa4] sm:$0xf]
    %v87 = vld [vmem:[#allocation5 + $0xa8] sm:$0xf]
    %v88 = vld [vmem:[#allocation5 + $0xac] sm:$0xf]
    %v89 = vld [vmem:[#allocation5 + $0xb0] sm:$0xf]
    %v90 = vld [vmem:[#allocation5 + $0xb4] sm:$0xf]
    %v91 = vld [vmem:[#allocation5 + $0xb8] sm:$0xf]
    %v92 = vld [vmem:[#allocation5 + $0xbc] sm:$0xf]
    %v93 = vld [vmem:[#allocation5 + $0xc0] sm:$0xf]
    %v94 = vld [vmem:[#allocation5 + $0xc4] sm:$0xf]
    %v95 = vld [vmem:[#allocation5 + $0xc8] sm:$0xf]
    %v96 = vld [vmem:[#allocation5 + $0xcc] sm:$0xf]
    %v97 = vld [vmem:[#allocation5 + $0xd0] sm:$0xf]
    %v98 = vld [vmem:[#allocation5 + $0xd4] sm:$0xf]
    %v99 = vld [vmem:[#allocation5 + $0xd8] sm:$0xf]
    %v100 = vld [vmem:[#allocation5 + $0xdc] sm:$0xf]
    %v101 = vld [vmem:[#allocation5 + $0xe0] sm:$0xf]
    %v102 = vld [vmem:[#allocation5 + $0xe4] sm:$0xf]
    %v103 = vld [vmem:[#allocation5 + $0xe8] sm:$0xf]
    %v104 = vld [vmem:[#allocation5 + $0xec] sm:$0xf]
    %v105 = vld [vmem:[#allocation5 + $0xf0] sm:$0xf]
    %v106 = vld [vmem:[#allocation5 + $0xf4] sm:$0xf]
    %v107 = vld [vmem:[#allocation5 + $0xf8] sm:$0xf]
    %v108 = vld [vmem:[#allocation5 + $0xfc] sm:$0xf]
    %v109 = vld [vmem:[#allocation5 + $0x100] sm:$0xf]
    %v110 = vld [vmem:[#allocation5 + $0x104] sm:$0xf]
    %v111 = vld [vmem:[#allocation5 + $0x108] sm:$0xf]
    %v112 = vld [vmem:[#allocation5 + $0x10c] sm:$0xf]
    %v113 = vld [vmem:[#allocation5 + $0x110] sm:$0xf]
    %v114 = vld [vmem:[#allocation5 + $0x114] sm:$0xf]
    %v115 = vld [vmem:[#allocation5 + $0x118] sm:$0xf]
    %v116 = vld [vmem:[#allocation5 + $0x11c] sm:$0xf]
    %v117 = vld [vmem:[#allocation5 + $0x120] sm:$0xf]
    %v118 = vld [vmem:[#allocation5 + $0x124] sm:$0x3]
    %v119 = vld [vmem:[%s2] sm:$0x1]
    %v121 = vlaneseq
    %v122 = vshrl.u32 %v121, 7
    %v123 = vsub.s32 0, %v122
    %v124 = vrot.slane %v119, %v123
    %v129 = vunpack.c.l.b16 %v42
    %v130 = vunpack.c.h.b16 %v42
    %v131 = vunpack.c.l.b16 %v43
    %v132 = vunpack.c.h.b16 %v43
    %v133 = vunpack.c.l.b16 %v44
    %v134 = vpack.c.b16 %v129, %v129
    %v135 = vpack.c.b16 %v130, %v130
    %v136 = vpack.c.b16 %v131, %v131
    %v137 = vpack.c.b16 %v132, %v132
    %v138 = vpack.c.b16 %v133, %v133
    %v217 = vunpack.c.l.b16 %v45
    %v218 = vunpack.c.l.b16 %v46
    %v219 = vunpack.c.l.b16 %v47
    %v220 = vunpack.c.l.b16 %v48
    %v221 = vunpack.c.l.b16 %v49
    %v222 = vunpack.c.l.b16 %v50
    %v223 = vunpack.c.l.b16 %v51
    %v224 = vunpack.c.l.b16 %v52
    %v225 = vunpack.c.l.b16 %v53
    %v226 = vunpack.c.l.b16 %v54
    %v227 = vunpack.c.l.b16 %v55
    %v228 = vunpack.c.l.b16 %v56
    %v229 = vunpack.c.l.b16 %v57
    %v230 = vunpack.c.l.b16 %v58
    %v231 = vunpack.c.l.b16 %v59
    %v232 = vunpack.c.l.b16 %v60
    %v233 = vunpack.c.l.b16 %v61
    %v234 = vunpack.c.l.b16 %v62
    %v235 = vunpack.c.l.b16 %v63
    %v236 = vunpack.c.l.b16 %v64
    %v237 = vunpack.c.l.b16 %v65
    %v238 = vunpack.c.l.b16 %v66
    %v239 = vunpack.c.l.b16 %v67
    %v240 = vunpack.c.l.b16 %v68
    %v241 = vunpack.c.l.b16 %v69
    %v242 = vunpack.c.l.b16 %v70
    %v243 = vunpack.c.l.b16 %v71
    %v244 = vunpack.c.l.b16 %v72
    %v245 = vunpack.c.l.b16 %v73
    %v246 = vunpack.c.l.b16 %v74
    %v247 = vunpack.c.l.b16 %v75
    %v248 = vunpack.c.l.b16 %v76
    %v249 = vunpack.c.l.b16 %v77
    %v250 = vunpack.c.l.b16 %v78
    %v251 = vunpack.c.l.b16 %v79
    %v252 = vunpack.c.l.b16 %v80
    %v253 = vunpack.c.l.b16 %v81
    %v254 = vunpack.c.l.b16 %v82
    %v255 = vunpack.c.l.b16 %v83
    %v256 = vunpack.c.l.b16 %v84
    %v257 = vunpack.c.l.b16 %v85
    %v258 = vunpack.c.l.b16 %v86
    %v259 = vunpack.c.l.b16 %v87
    %v260 = vunpack.c.l.b16 %v88
    %v261 = vunpack.c.l.b16 %v89
    %v262 = vunpack.c.l.b16 %v90
    %v263 = vunpack.c.l.b16 %v91
    %v264 = vunpack.c.l.b16 %v92
    %v265 = vunpack.c.l.b16 %v93
    %v266 = vunpack.c.l.b16 %v94
    %v267 = vunpack.c.l.b16 %v95
    %v268 = vunpack.c.l.b16 %v96
    %v269 = vunpack.c.l.b16 %v97
    %v270 = vunpack.c.l.b16 %v98
    %v271 = vunpack.c.l.b16 %v99
    %v272 = vunpack.c.l.b16 %v100
    %v273 = vunpack.c.l.b16 %v101
    %v274 = vunpack.c.l.b16 %v102
    %v275 = vunpack.c.l.b16 %v103
    %v276 = vunpack.c.l.b16 %v104
    %v277 = vunpack.c.l.b16 %v105
    %v278 = vunpack.c.l.b16 %v106
    %v279 = vunpack.c.l.b16 %v107
    %v280 = vunpack.c.l.b16 %v108
    %v281 = vunpack.c.l.b16 %v109
    %v282 = vunpack.c.l.b16 %v110
    %v283 = vunpack.c.l.b16 %v111
    %v284 = vunpack.c.l.b16 %v112
    %v285 = vunpack.c.l.b16 %v113
    %v286 = vunpack.c.l.b16 %v114
    %v287 = vunpack.c.l.b16 %v115
    %v288 = vunpack.c.l.b16 %v116
    %v289 = vunpack.c.l.b16 %v117
    %v290 = vunpack.c.l.b16 %v118
    %v291 = vpack.c.b16 %v218, %v217
    %v292 = vpack.c.b16 %v220, %v219
    %v293 = vpack.c.b16 %v222, %v221
    %v294 = vpack.c.b16 %v224, %v223
    %v295 = vpack.c.b16 %v226, %v225
    %v296 = vpack.c.b16 %v228, %v227
    %v297 = vpack.c.b16 %v230, %v229
    %v298 = vpack.c.b16 %v232, %v231
    %v299 = vpack.c.b16 %v234, %v233
    %v300 = vpack.c.b16 %v236, %v235
    %v301 = vpack.c.b16 %v238, %v237
    %v302 = vpack.c.b16 %v240, %v239
    %v303 = vpack.c.b16 %v242, %v241
    %v304 = vpack.c.b16 %v244, %v243
    %v305 = vpack.c.b16 %v246, %v245
    %v306 = vpack.c.b16 %v248, %v247
    %v307 = vpack.c.b16 %v250, %v249
    %v308 = vpack.c.b16 %v252, %v251
    %v309 = vpack.c.b16 %v254, %v253
    %v310 = vpack.c.b16 %v256, %v255
    %v311 = vpack.c.b16 %v258, %v257
    %v312 = vpack.c.b16 %v260, %v259
    %v313 = vpack.c.b16 %v262, %v261
    %v314 = vpack.c.b16 %v264, %v263
    %v315 = vpack.c.b16 %v266, %v265
    %v316 = vpack.c.b16 %v268, %v267
    %v317 = vpack.c.b16 %v270, %v269
    %v318 = vpack.c.b16 %v272, %v271
    %v319 = vpack.c.b16 %v274, %v273
    %v320 = vpack.c.b16 %v276, %v275
    %v321 = vpack.c.b16 %v278, %v277
    %v322 = vpack.c.b16 %v280, %v279
    %v323 = vpack.c.b16 %v282, %v281
    %v324 = vpack.c.b16 %v284, %v283
    %v325 = vpack.c.b16 %v286, %v285
    %v326 = vpack.c.b16 %v288, %v287
    %v327 = vpack.c.b16 %v290, %v289
    %vm364 = vcmask 621568
    %v366 = vsel %vm364, %v138, 0
    %vm368 = vcmask 1045504
    %v370 = vsel %vm368, %v327, 0
    %372 = vmatprep.subr.bf16.mxu0 0
    %373 = vmatpush1.bf16.msra.mxu0 %v291
    %374 = vmatprep.subr.bf16.mxu0 0
    %375 = vmatpush1.bf16.msra.mxu0 %v292
    %376 = vmatprep.subr.bf16.mxu0 0
    %377 = vmatpush1.bf16.msra.mxu0 %v293
    %378 = vmatprep.subr.bf16.mxu0 0
    %379 = vmatpush1.bf16.msra.mxu0 %v294
    %380 = vmatprep.subr.bf16.mxu0 0
    %381 = vmatpush1.bf16.msra.mxu0 %v295
    %382 = vmatprep.subr.bf16.mxu0 0
    %383 = vmatpush1.bf16.msra.mxu0 %v296
    %384 = vmatprep.subr.bf16.mxu0 0
    %385 = vmatpush1.bf16.msra.mxu0 %v297
    %386 = vmatprep.subr.bf16.mxu0 0
    %387 = vmatpush1.bf16.msra.mxu0 %v298
    %388 = vmatprep.subr.bf16.mxu0 0
    %389 = vmatpush1.bf16.msra.mxu0 %v299
    %390 = vmatprep.subr.bf16.mxu0 0
    %391 = vmatpush1.bf16.msra.mxu0 %v300
    %392 = vmatprep.subr.bf16.mxu0 0
    %393 = vmatpush1.bf16.msra.mxu0 %v301
    %394 = vmatprep.subr.bf16.mxu0 0
    %395 = vmatpush1.bf16.msra.mxu0 %v302
    %396 = vmatprep.subr.bf16.mxu0 0
    %397 = vmatpush1.bf16.msra.mxu0 %v303
    %398 = vmatprep.subr.bf16.mxu0 0
    %399 = vmatpush1.bf16.msra.mxu0 %v304
    %400 = vmatprep.subr.bf16.mxu0 0
    %401 = vmatpush1.bf16.msra.mxu0 %v305
    %402 = vmatprep.subr.bf16.mxu0 0
    %403 = vmatpush1.bf16.msra.mxu0 %v306
    %404 = vmatprep.mubr.bf16.mxu0 %v135
    %405 = vmatmul.mubr.bf16.gmra.mrb[0].mxu0 %v134
    %v406 = vpop.f32.mrb[0].mxu0
    %v407 = vadd.f32 %v124, %v406
    %v408 = vpop.f32.mrb[0].mxu0
    %v409 = vpop.f32.mrb[0].mxu0
    %v410 = vpop.f32.mrb[0].mxu0
    %411 = vdwg.mxu0
    %412 = vmatprep.subr.bf16.mxu0 0
    %413 = vmatpush1.bf16.msra.mxu0 %v307
    %414 = vmatprep.subr.bf16.mxu0 0
    %415 = vmatpush1.bf16.msra.mxu0 %v308
    %416 = vmatprep.subr.bf16.mxu0 0
    %417 = vmatpush1.bf16.msra.mxu0 %v309
    %418 = vmatprep.subr.bf16.mxu0 0
    %419 = vmatpush1.bf16.msra.mxu0 %v310
    %420 = vmatprep.subr.bf16.mxu0 0
    %421 = vmatpush1.bf16.msra.mxu0 %v311
    %422 = vmatprep.subr.bf16.mxu0 0
    %423 = vmatpush1.bf16.msra.mxu0 %v312
    %424 = vmatprep.subr.bf16.mxu0 0
    %425 = vmatpush1.bf16.msra.mxu0 %v313
    %426 = vmatprep.subr.bf16.mxu0 0
    %427 = vmatpush1.bf16.msra.mxu0 %v314
    %428 = vmatprep.subr.bf16.mxu0 0
    %429 = vmatpush1.bf16.msra.mxu0 %v315
    %430 = vmatprep.subr.bf16.mxu0 0
    %431 = vmatpush1.bf16.msra.mxu0 %v316
    %432 = vmatprep.subr.bf16.mxu0 0
    %433 = vmatpush1.bf16.msra.mxu0 %v317
    %434 = vmatprep.subr.bf16.mxu0 0
    %435 = vmatpush1.bf16.msra.mxu0 %v318
    %436 = vmatprep.subr.bf16.mxu0 0
    %437 = vmatpush1.bf16.msra.mxu0 %v319
    %438 = vmatprep.subr.bf16.mxu0 0
    %439 = vmatpush1.bf16.msra.mxu0 %v320
    %440 = vmatprep.subr.bf16.mxu0 0
    %441 = vmatpush1.bf16.msra.mxu0 %v321
    %442 = vmatprep.subr.bf16.mxu0 0
    %443 = vmatpush1.bf16.msra.mxu0 %v322
    %444 = vmatprep.mubr.bf16.mxu0 %v137
    %445 = vmatmul.mubr.bf16.gmra.mrb[0].mxu0 %v136
    %v446 = vpop.f32.mrb[0].mxu0
    %v447 = vadd.f32 %v407, %v446
    %v448 = vpop.f32.mrb[0].mxu0
    %v449 = vpop.f32.mrb[0].mxu0
    %v450 = vpop.f32.mrb[0].mxu0
    %451 = vdwg.mxu0
    %452 = vmatprep.subr.bf16.mxu0 0
    %453 = vmatpush1.bf16.msra.mxu0 %v323
    %454 = vmatprep.subr.bf16.mxu0 0
    %455 = vmatpush1.bf16.msra.mxu0 %v324
    %456 = vmatprep.subr.bf16.mxu0 0
    %457 = vmatpush1.bf16.msra.mxu0 %v325
    %458 = vmatprep.subr.bf16.mxu0 0
    %459 = vmatpush1.bf16.msra.mxu0 %v326
    %460 = vmatprep.subr.bf16.mxu0 0
    %461 = vmatpush1.bf16.msra.mxu0 %v370
    %462 = vmatprep.subr.bf16.mxu0 0
    %463 = vmatpush1.bf16.msra.mxu0 0
    %464 = vmatprep.subr.bf16.mxu0 0
    %465 = vmatpush1.bf16.msra.mxu0 0
    %466 = vmatprep.subr.bf16.mxu0 0
    %467 = vmatpush1.bf16.msra.mxu0 0
    %468 = vmatprep.subr.bf16.mxu0 0
    %469 = vmatpush1.bf16.msra.mxu0 0
    %470 = vmatprep.subr.bf16.mxu0 0
    %471 = vmatpush1.bf16.msra.mxu0 0
    %472 = vmatprep.subr.bf16.mxu0 0
    %473 = vmatpush1.bf16.msra.mxu0 0
    %474 = vmatprep.subr.bf16.mxu0 0
    %475 = vmatpush1.bf16.msra.mxu0 0
    %476 = vmatprep.subr.bf16.mxu0 0
    %477 = vmatpush1.bf16.msra.mxu0 0
    %478 = vmatprep.subr.bf16.mxu0 0
    %479 = vmatpush1.bf16.msra.mxu0 0
    %480 = vmatprep.subr.bf16.mxu0 0
    %481 = vmatpush1.bf16.msra.mxu0 0
    %482 = vmatprep.subr.bf16.mxu0 0
    %483 = vmatpush1.bf16.msra.mxu0 0
    %484 = vmatprep.mubr.bf16.mxu0 0
    %485 = vmatmul.mubr.bf16.gmra.mrb[0].mxu0 %v366
    %v486 = vpop.f32.mrb[0].mxu0
    %v487 = vadd.f32 %v447, %v486
    %v488 = vpop.f32.mrb[0].mxu0
    %v489 = vpop.f32.mrb[0].mxu0
    %v490 = vpop.f32.mrb[0].mxu0
    %491 = vdwg.mxu0
    %492 = vst [vmem:[#allocation7] sm:$0xff] %v487
    // Predicated region
    $region22: #{tpu_custom_call.1} parent=1 // pred_check
      _
    $region23: #{tpu_custom_call.1} parent=1 // pred_check_branch
      %494 = sbr.rel (0) target = $region25
    $region24: #{tpu_custom_call.1} parent=1 // pred_region
      %s496 = ssub.s32 128, 128
      %497 = vsyncadd [#allocation4], %s496
      %s499 = sshll.u32 [#allocation7], 4
      %s500 = int_to_ptr.vmem [resolvable:$true] %s499
      %502 = dma.vmem_to_hbm [thread:$0]  %s500, 128, %s3, [#allocation4]
    $region25: #{tpu_custom_call.1} parent=1 // pred_fallthru
      _
    // Predicated region
    $region26: #{tpu_custom_call.1} parent=1 // pred_check
      _
    $region27: #{tpu_custom_call.1} parent=1 // pred_check_branch
      %504 = sbr.rel (0) target = $region29
    $region28: #{tpu_custom_call.1} parent=1 // pred_region
      %505 = dma.done [#allocation4], 128
    $region29: #{tpu_custom_call.1} parent=1 // pred_fallthru
      _
    %506 = vsyncpa [#allocation3], 1
    %507 = vsyncpa [#allocation6], 1
    %508 = vsyncpa [#allocation4], 1

</llo_original>
